<compile_context>
chip_gen: v5e
topology: v5e:2x2
jax: 0.10.0
libtpu: 0.0.40
codegen_flags: <defaults>
</compile_context>

<pallas_src>
import jax
import jax.numpy as jnp
from jax.experimental import pallas as pl
from jax.experimental.pallas import tpu as pltpu

LANE = 128                         # lane width: last dims padded to this
_VMEM_BUDGET = 24 * 1024 * 1024    # tile budget (safe under v7x 32 MiB scoped default)
_VMEM_LIMIT = 32 * 1024 * 1024     # explicit scoped-VMEM limit handed to Mosaic
_MAX_BLOCK_B = 1024                # batch tiles beyond ~1K rows plateau on HBM roofline


def _round_up(x, m):
    return (x + m - 1) // m * m


def mlp_kernel(x_ref, w_ref, b_ref, o_ref):
    # x_ref: (block_b, Hp)   compute dtype (f32 or bf16)
    # w_ref: (Hp, block_n)   compute dtype (pre-transposed so y = x @ w)
    # b_ref: (1, block_n)    f32
    # o_ref: (block_b, block_n)
    y = jnp.dot(x_ref[...], w_ref[...], preferred_element_type=jnp.float32)
    y = y + b_ref[...]                      # bias add in f32
    o_ref[...] = jnp.tanh(y).astype(o_ref.dtype)   # tanh in f32 (EUP), cast on store


def _choose_tiles(batch, hp_in, hp_out, x_bytes, w_bytes, o_bytes, sub):
    """Pick (block_b, block_n) so double-buffered tiles fit the VMEM budget."""
    budget = _VMEM_BUDGET
    # N tile: largest multiple of 128 that divides Hp_out and whose
    # double-buffered (Hp_in, block_n) weight slab uses <= half the budget.
    block_n = LANE
    n = LANE
    while n <= hp_out:
        if hp_out % n == 0 and 2 * hp_in * n * w_bytes <= budget // 2:
            block_n = n
        n += LANE
    # Batch tile: fit double-buffered x and out tiles in what is left.
    w_cost = 2 * hp_in * block_n * w_bytes + 2 * block_n * 4  # weight + bias (dbl-buf)
    per_row = 2 * (hp_in * x_bytes + block_n * o_bytes)
    rem = max(budget - w_cost, per_row)                        # at least one row
    block_b = max(sub, (rem // per_row) // sub * sub)
    block_b = min(block_b, _round_up(batch, sub), _MAX_BLOCK_B)
    return block_b, block_n


def prepare_mlp_params(weight, bias, *, compute_dtype=None):
    """Hoisted, do-once param prep: transpose + lane-pad (+ optional bf16 cast).

    weight: (H_out, H_in) torch nn.Linear layout.  Returns (w_t, b2d, h_out).
    """
    h_out, h_in = weight.shape
    hp_in = _round_up(h_in, LANE)
    hp_out = _round_up(h_out, LANE)
    w_t = weight.T                                            # (in, out): kernel does x @ w_t
    w_t = jnp.pad(w_t, ((0, hp_in - h_in), (0, hp_out - h_out)))
    if compute_dtype is not None:
        w_t = w_t.astype(compute_dtype)
    b2d = jnp.pad(bias.astype(jnp.float32), (0, hp_out - h_out)).reshape(1, hp_out)
    return w_t, b2d, h_out


def mlp_layer_prepared(features, w_t, b2d, h_out):
    """features: (B, H_in).  w_t/b2d from prepare_mlp_params.  Returns (B, h_out)."""
    B, h_in = features.shape
    hp_in, hp_out = w_t.shape
    assert h_in <= hp_in, "features hidden dim does not match prepared weight"

    out_dtype = features.dtype
    cdt = w_t.dtype                                           # compute dtype set at prep time
    x_bytes = jnp.dtype(cdt).itemsize
    w_bytes = jnp.dtype(w_t.dtype).itemsize
    o_bytes = jnp.dtype(out_dtype).itemsize
    sub = 8 if x_bytes >= 4 else (16 if x_bytes == 2 else 32)  # sublane packing

    block_b, block_n = _choose_tiles(B, hp_in, hp_out, x_bytes, w_bytes, o_bytes, sub)
    bp = _round_up(B, block_b)

    x = features
    if x.dtype != cdt:
        x = x.astype(cdt)
    x = jnp.pad(x, ((0, bp - B), (0, hp_in - h_in)))          # lane/sublane-dense input

    grid = (bp // block_b, hp_out // block_n)

    out = pl.pallas_call(
        mlp_kernel,
        out_shape=jax.ShapeDtypeStruct((bp, hp_out), out_dtype),
        grid_spec=pltpu.PrefetchScalarGridSpec(
            num_scalar_prefetch=0,
            grid=grid,
            in_specs=[
                pl.BlockSpec((block_b, hp_in), lambda i, j: (i, 0)),   # x batch tile
                pl.BlockSpec((hp_in, block_n), lambda i, j: (0, j)),   # weight N-slab
                pl.BlockSpec((1, block_n), lambda i, j: (0, j)),       # bias slab (f32)
            ],
            out_specs=pl.BlockSpec((block_b, block_n), lambda i, j: (i, j)),
        ),
        compiler_params=pltpu.CompilerParams(
            dimension_semantics=("parallel", "parallel"),
            vmem_limit_bytes=_VMEM_LIMIT,
        ),
    )(x, w_t, b2d)

    return out[:B, :h_out]


def mlp_layer(features, weight, bias, *, compute_dtype=None):
    """Drop-in convenience wrapper (prepares params on every call)."""
    w_t, b2d, h_out = prepare_mlp_params(weight, bias, compute_dtype=compute_dtype)
    return mlp_layer_prepared(features, w_t, b2d, h_out)


def mlp_ref(features, weight, bias):
    return jnp.tanh(features @ weight.T + bias)


if __name__ == "__main__":
    key = jax.random.PRNGKey(0)
    kx, kw, kb = jax.random.split(key, 3)

    batch, hidden = 8, 32
    features = jax.random.normal(kx, (batch, hidden), dtype=jnp.float32)
    # Deterministic "init" of nn.Linear(hidden, hidden) params (torch layout).
    weight = jax.random.normal(kw, (hidden, hidden), dtype=jnp.float32) * 0.02
    bias = jax.random.normal(kb, (hidden,), dtype=jnp.float32) * 0.02

    ref = mlp_ref(features, weight, bias)

    # f32 path — exact semantics of the PyTorch module.
    w_t, b2d, h_out = prepare_mlp_params(weight, bias)        # hoisted: done once
    out = jax.block_until_ready(mlp_layer_prepared(features, w_t, b2d, h_out))
    assert out.shape == (batch, hidden)
    assert jnp.allclose(out, ref, atol=1e-5, rtol=1e-5)

    # bf16-operand MXU path (recommended at realistic H) — relaxed tolerance.
    w_t16, b2d16, h_out16 = prepare_mlp_params(weight, bias, compute_dtype=jnp.bfloat16)
    out16 = jax.block_until_ready(mlp_layer_prepared(features, w_t16, b2d16, h_out16))
    assert out16.shape == (batch, hidden)
    assert jnp.allclose(out16, ref, atol=2e-2, rtol=2e-2)

    print("KERNEL_OK")
</pallas_src>

<mosaic_0001>
module attributes {stable_mosaic.version = 11 : i64} {
  func.func @mlp_kernel(%arg0: i32, %arg1: i32, %arg2: memref<8x128xf32, #tpu.memory_space<vmem>>, %arg3: memref<128x128xf32, #tpu.memory_space<vmem>>, %arg4: memref<1x128xf32, #tpu.memory_space<vmem>>, %arg5: memref<8x128xf32, #tpu.memory_space<vmem>>) attributes {dimension_semantics = [#tpu.dimension_semantics<parallel>, #tpu.dimension_semantics<parallel>], iteration_bounds = array<i64: 1, 1>, scalar_prefetch = 0 : i64, scratch_operands = 0 : i64, tpu.core_type = #tpu.core_type<tc>, window_params = [{transform_indices = @transform_0, window_bounds = array<i64: 8, 128>}, {transform_indices = @transform_1, window_bounds = array<i64: 128, 128>}, {transform_indices = @transform_2, window_bounds = array<i64: 1, 128>}, {transform_indices = @transform_3, window_bounds = array<i64: 8, 128>}]} {
    %c0 = arith.constant 0 : index
    %c0_0 = arith.constant 0 : index
    %0 = vector.load %arg2[%c0, %c0_0] : memref<8x128xf32, #tpu.memory_space<vmem>>, vector<8x128xf32>
    %c0_1 = arith.constant 0 : index
    %c0_2 = arith.constant 0 : index
    %1 = vector.load %arg3[%c0_1, %c0_2] : memref<128x128xf32, #tpu.memory_space<vmem>>, vector<128x128xf32>
    %cst = arith.constant dense<0.000000e+00> : vector<8x128xf32>
    %2 = tpu.matmul %0, %1, %cst {dimension_numbers = #tpu.dot_dimension_numbers<[1], [0], [0], [1], [0, 0, 1, 1], [], []>} : vector<8x128xf32>, vector<128x128xf32>, vector<8x128xf32> -> vector<8x128xf32>
    %c0_3 = arith.constant 0 : index
    %c0_4 = arith.constant 0 : index
    %3 = vector.load %arg4[%c0_3, %c0_4] : memref<1x128xf32, #tpu.memory_space<vmem>>, vector<1x128xf32>
    %4 = vector.broadcast %3 : vector<1x128xf32> to vector<8x128xf32>
    %5 = arith.addf %2, %4 : vector<8x128xf32>
    %6 = math.tanh %5 : vector<8x128xf32>
    %c0_5 = arith.constant 0 : index
    %c0_6 = arith.constant 0 : index
    %7 = vector.load %arg5[%c0_5, %c0_6] : memref<8x128xf32, #tpu.memory_space<vmem>>, vector<8x128xf32>
    tpu.vector_store %arg5[%c0_5, %c0_6], %6 {strides = array<i32>} : memref<8x128xf32, #tpu.memory_space<vmem>>, vector<8x128xf32>,
    return
  }
  func.func @transform_0(%arg0: i32, %arg1: i32) -> (i32, i32) {
    %c0_i32 = arith.constant 0 : i32
    %c0_i32_0 = arith.constant 0 : i32
    return %arg0, %c0_i32 : i32, i32
  }
  func.func @transform_1(%arg0: i32, %arg1: i32) -> (i32, i32) {
    %c0_i32 = arith.constant 0 : i32
    %c0_i32_0 = arith.constant 0 : i32
    return %c0_i32, %arg1 : i32, i32
  }
  func.func @transform_2(%arg0: i32, %arg1: i32) -> (i32, i32) {
    %c0_i32 = arith.constant 0 : i32
    %c0_i32_0 = arith.constant 0 : i32
    return %c0_i32, %arg1 : i32, i32
  }
  func.func @transform_3(%arg0: i32, %arg1: i32) -> (i32, i32) {
    %c0_i32 = arith.constant 0 : i32
    return %arg0, %arg1 : i32, i32
  }
}

</mosaic_0001>

<llo_original>
// kernel: tpu_custom_call.1
$region0: #{tpu_custom_call.1}
  #allocation0 [shape = 'u32[]', space=smem, size = 0x4, offset = 0x4, fixed_abs, tag = 'smem constant byte address 0x4 - core index']
  #allocation1 [shape = 'u32[72,128]{1,0:T(1,128)}', space=vmem, size = 0x9000, scoped, tag = 'internal scratch']
  %s0 = inlined_call_operand.hbm [shape: f32[8,128], index: 0, kind: input, shape index: {}]
  %s1 = inlined_call_operand.hbm [shape: f32[128,128], index: 1, kind: input, shape index: {}]
  %s2 = inlined_call_operand.vmem [shape: f32[1,128], index: 2, kind: input, shape index: {}]
  %s3 = inlined_call_operand.hbm [shape: f32[8,128], index: 3, kind: output, shape index: {}]
  %s4 = sld [smem:[#allocation0]]
  $region30: #{tpu_custom_call.1} parent=0
    _
  %s6 = ssub.s32 1, %s4
  %s7 = scalar_select 0, %s6, %s4
  $region1: #{tpu_custom_call.1} parent=0
    #allocation2 [shape = 'u8[4096]{0}', space=vmem, size = 0x1000, scoped, tag = 'input window, operand 0, single buffered']
    #allocation3 [shape = 's32[1]{0}', space=sflag, size = 0x4, scoped, tag = 'scoped memory for tpu_custom_call.1']
    #allocation4 [shape = 's32[1]{0}', space=sflag, size = 0x4, scoped, tag = 'scoped memory for tpu_custom_call.1']
    #allocation5 [shape = 'u8[65536]{0}', space=vmem, size = 0x10000, scoped, tag = 'input window, operand 1, single buffered']
    #allocation6 [shape = 's32[1]{0}', space=sflag, size = 0x4, scoped, tag = 'scoped memory for tpu_custom_call.1']
    #allocation7 [shape = 'u8[4096]{0}', space=vmem, size = 0x1000, scoped, tag = 'output window, operand 0, single buffered']
    %8 = vsyncpa [#allocation3], 0
    %9 = vsyncpa [#allocation6], 0
    %10 = vsyncpa [#allocation4], 0
    // Predicated region
    $region2: #{tpu_custom_call.1} parent=1 // pred_check
      _
    $region3: #{tpu_custom_call.1} parent=1 // pred_check_branch
      %12 = sbr.rel (0) target = $region5
    $region4: #{tpu_custom_call.1} parent=1 // pred_region
      %14 = vsyncadd [#allocation3], 0
      %s16 = sshll.u32 %s0, 4
      %s17 = int_to_ptr.hbm [resolvable:$true] %s16
      %s18 = sshll.u32 [#allocation2], 4
      %s19 = int_to_ptr.vmem [resolvable:$true] %s18
      %21 = dma.hbm_to_vmem [thread:$0]  %s17, 128, %s19, [#allocation3]
    $region5: #{tpu_custom_call.1} parent=1 // pred_fallthru
      _
    // Predicated region
    $region6: #{tpu_custom_call.1} parent=1 // pred_check
      _
    $region7: #{tpu_custom_call.1} parent=1 // pred_check_branch
      %23 = sbr.rel (0) target = $region9
    $region8: #{tpu_custom_call.1} parent=1 // pred_region
      %25 = vsyncadd [#allocation6], 0
      %s26 = sshll.u32 %s1, 4
      %s27 = int_to_ptr.hbm [resolvable:$true] %s26
      %s28 = sshll.u32 [#allocation5], 4
      %s29 = int_to_ptr.vmem [resolvable:$true] %s28
      %34 = dma.hbm_to_vmem [thread:$0]  %s27, 2048, %s29, [#allocation6], 128, 128, 8
    $region9: #{tpu_custom_call.1} parent=1 // pred_fallthru
      _
    // Predicated region
    $region10: #{tpu_custom_call.1} parent=1 // pred_check
      _
    $region11: #{tpu_custom_call.1} parent=1 // pred_check_branch
      %36 = sbr.rel (0) target = $region13
    $region12: #{tpu_custom_call.1} parent=1 // pred_region
      _
    $region13: #{tpu_custom_call.1} parent=1 // pred_fallthru
      _
    // Predicated region
    $region14: #{tpu_custom_call.1} parent=1 // pred_check
      _
    $region15: #{tpu_custom_call.1} parent=1 // pred_check_branch
      %38 = sbr.rel (0) target = $region17
    $region16: #{tpu_custom_call.1} parent=1 // pred_region
      %40 = dma.done [#allocation3], 128
    $region17: #{tpu_custom_call.1} parent=1 // pred_fallthru
      _
    // Predicated region
    $region18: #{tpu_custom_call.1} parent=1 // pred_check
      _
    $region19: #{tpu_custom_call.1} parent=1 // pred_check_branch
      %42 = sbr.rel (0) target = $region21
    $region20: #{tpu_custom_call.1} parent=1 // pred_region
      %44 = dma.done [#allocation6], 2048
    $region21: #{tpu_custom_call.1} parent=1 // pred_fallthru
      _
    %v45 = vld [vmem:[#allocation2] sm:$0xff]
    %v46 = vld [vmem:[#allocation5] sm:$0xff]
    %v47 = vld [vmem:[#allocation5 + $0x8] sm:$0xff]
    %v48 = vld [vmem:[#allocation5 + $0x10] sm:$0xff]
    %v49 = vld [vmem:[#allocation5 + $0x18] sm:$0xff]
    %v50 = vld [vmem:[#allocation5 + $0x20] sm:$0xff]
    %v51 = vld [vmem:[#allocation5 + $0x28] sm:$0xff]
    %v52 = vld [vmem:[#allocation5 + $0x30] sm:$0xff]
    %v53 = vld [vmem:[#allocation5 + $0x38] sm:$0xff]
    %v54 = vld [vmem:[#allocation5 + $0x40] sm:$0xff]
    %v55 = vld [vmem:[#allocation5 + $0x48] sm:$0xff]
    %v56 = vld [vmem:[#allocation5 + $0x50] sm:$0xff]
    %v57 = vld [vmem:[#allocation5 + $0x58] sm:$0xff]
    %v58 = vld [vmem:[#allocation5 + $0x60] sm:$0xff]
    %v59 = vld [vmem:[#allocation5 + $0x68] sm:$0xff]
    %v60 = vld [vmem:[#allocation5 + $0x70] sm:$0xff]
    %v61 = vld [vmem:[#allocation5 + $0x78] sm:$0xff]
    %v62 = vld [vmem:[%s2] sm:$0x1]
    %v64 = vperm.slane %v62, 0
    %66 = vmatpush.msra.mxu0 %v61
    %67 = vmatpush.msra.mxu0 %v60
    %68 = vmatpush.msra.mxu0 %v59
    %69 = vmatpush.msra.mxu0 %v58
    %70 = vmatpush.msra.mxu0 %v57
    %71 = vmatpush.msra.mxu0 %v56
    %72 = vmatpush.msra.mxu0 %v55
    %73 = vmatpush.msra.mxu0 %v54
    %74 = vmatpush.msra.mxu0 %v53
    %75 = vmatpush.msra.mxu0 %v52
    %76 = vmatpush.msra.mxu0 %v51
    %77 = vmatpush.msra.mxu0 %v50
    %78 = vmatpush.msra.mxu0 %v49
    %79 = vmatpush.msra.mxu0 %v48
    %80 = vmatpush.msra.mxu0 %v47
    %81 = vmatpush.msra.mxu0 %v46
    %82 = vmatmul.f32.gmra.mxu0 %v45
    %v83 = vpop.f32.mrf.mxu0
    %v84 = vadd.f32 %v64, %v83
    %85 = vdwg.mxu0
    %v86 = vtanh.pop %v84
    %87 = vst [vmem:[#allocation7] sm:$0xff] %v86
    // Predicated region
    $region22: #{tpu_custom_call.1} parent=1 // pred_check
      _
    $region23: #{tpu_custom_call.1} parent=1 // pred_check_branch
      %89 = sbr.rel (0) target = $region25
    $region24: #{tpu_custom_call.1} parent=1 // pred_region
      %91 = vsyncadd [#allocation4], 0
      %s93 = sshll.u32 [#allocation7], 4
      %s94 = int_to_ptr.vmem [resolvable:$true] %s93
      %s95 = sshll.u32 %s3, 4
      %s96 = int_to_ptr.hbm [resolvable:$true] %s95
      %98 = dma.vmem_to_hbm [thread:$0]  %s94, 128, %s96, [#allocation4]
    $region25: #{tpu_custom_call.1} parent=1 // pred_fallthru
      _
    // Predicated region
    $region26: #{tpu_custom_call.1} parent=1 // pred_check
      _
    $region27: #{tpu_custom_call.1} parent=1 // pred_check_branch
      %100 = sbr.rel (0) target = $region29
    $region28: #{tpu_custom_call.1} parent=1 // pred_region
      %102 = dma.done [#allocation4], 128
    $region29: #{tpu_custom_call.1} parent=1 // pred_fallthru
      _
    %103 = vsyncpa [#allocation3], 1
    %104 = vsyncpa [#allocation6], 1
    %105 = vsyncpa [#allocation4], 1

</llo_original>
